<compile_context>
chip_gen: v5e
topology: v5e:2x2
jax: 0.10.0
libtpu: 0.0.40
codegen_flags: <defaults>
</compile_context>

<pallas_src>
import functools

import numpy as np
import jax
import jax.numpy as jnp
from jax.experimental import pallas as pl
from jax.experimental.pallas import tpu as pltpu


_TARGET_TILE_BYTES = 8 << 20      # in + out bytes per grid step
_MIN_GRID_STEPS = 8               # keep the pipeline / both v7x TCs busy
_JAX_FALLBACK_BYTES = 256 << 10   # tiny problems: let XLA fuse the shifts


def _is_pow2(n: int) -> bool:
    return n > 0 and (n & (n - 1)) == 0


# --------------------------------------------------------------------------- #
# In-kernel digit helpers (no captured array constants)
# --------------------------------------------------------------------------- #
def _head_digits(x, k: int, num_tokens: int):
    """Top radix-`num_tokens` digit of every k-mer (non-negative inputs)."""
    if _is_pow2(num_tokens):
        return jnp.right_shift(x, (k - 1) * (int(num_tokens).bit_length() - 1))
    return x // (num_tokens ** (k - 1))


def _digit_at(last, e, k: int, num_tokens: int):
    """(last // num_tokens**e) % num_tokens with an exponent *array* `e`
    (clamped to [0, k-2]); `last` is (rows, 1) and broadcasts against e."""
    e = jnp.clip(e, 0, k - 2)
    if _is_pow2(num_tokens):
        shift = int(num_tokens).bit_length() - 1
        return jnp.right_shift(last, e * shift) & (num_tokens - 1)
    div = jnp.ones_like(e)
    for ee in range(1, k - 1):                      # tiny static unroll (k is small)
        div = jnp.where(e == ee, num_tokens ** ee, div)
    return (last // div) % num_tokens


# --------------------------------------------------------------------------- #
# Kernels
# --------------------------------------------------------------------------- #
def _kmer2seq_kernel_full(x_ref, o_ref, *, k: int, num_tokens: int, kmer_seq_len: int):
    """Full-column path: one column block per row tile (small/medium seq_len)."""
    Lk = kmer_seq_len
    x = x_ref[...]                                               # (tb, Lk)
    o_ref[:, :Lk] = _head_digits(x, k, num_tokens).astype(o_ref.dtype)
    last = x[:, Lk - 1:Lk]                                       # (tb, 1)
    e = (k - 2) - jax.lax.broadcasted_iota(jnp.int32, (x.shape[0], k - 1), 1)
    o_ref[:, Lk:] = _digit_at(last, e, k, num_tokens).astype(o_ref.dtype)


def _kmer2seq_kernel_tiled(x_ref, o_ref, *, k: int, num_tokens: int,
                           kmer_seq_len: int, col_tile: int, num_in_col_tiles: int):
    """Column-tiled path: grid = (row tiles, output column tiles)."""
    Lk, tc, nci = kmer_seq_len, col_tile, num_in_col_tiles
    j = pl.program_id(1)
    x = x_ref[...]                                               # (tb, tc)
    head = _head_digits(x, k, num_tokens)

    # Interior column tiles: pure head digits, one dense store.
    @pl.when(j < nci - 1)
    def _():
        o_ref[...] = head.astype(o_ref.dtype)

    # Last input column tile and (if seq_len spills past nci*tc) the extra
    # output-only tile, which re-reads input tile nci-1 via the index map.
    # Blend the k-1 tail digits of the LAST k-mer into the head values so each
    # tile is still written with a single dense store, exactly once.
    @pl.when(j >= nci - 1)
    def _():
        last_local = (Lk - 1) - (nci - 1) * tc                   # static offset
        last = x[:, last_local:last_local + 1]                   # (tb, 1)
        col = j * tc + jax.lax.broadcasted_iota(jnp.int32, head.shape, 1)
        tail = _digit_at(last, (k - 2) - (col - Lk), k, num_tokens)
        is_tail = (col >= Lk) & (col < Lk + (k - 1))
        o_ref[...] = jnp.where(is_tail, tail, head).astype(o_ref.dtype)


# --------------------------------------------------------------------------- #
# Pure-JAX fallback for tiny problems
# --------------------------------------------------------------------------- #
def _kmer2seq_jax(x: jax.Array, *, k: int, num_tokens: int) -> jax.Array:
    head = x // (num_tokens ** (k - 1))
    last = x[:, -1:]
    divisors = jnp.array([[num_tokens ** (k - kk - 1) for kk in range(1, k)]],
                         dtype=x.dtype)
    tail = (last // divisors) % num_tokens
    return jnp.concatenate([head, tail], axis=1)


# --------------------------------------------------------------------------- #
# Tiling policy + wrapper
# --------------------------------------------------------------------------- #
def _vmem_limit_bytes() -> int:
    try:
        cap = getattr(pltpu.get_tpu_info(), "vmem_capacity_bytes", None)
        if cap is not None and cap >= (128 << 20):
            return 64 << 20           # v5e / v6e: 128 MiB physical VMEM
    except Exception:
        pass
    return 32 << 20                   # safe ceiling on v7x (64 MiB physical)


def _choose_tiles(B, Lk, seq_len, itemsize, *, target_bytes=_TARGET_TILE_BYTES,
                  min_steps=_MIN_GRID_STEPS):
    """Return (row_tile, col_tile); col_tile is None for the full-column path."""
    bytes_per_row = (Lk + seq_len) * itemsize

    # Column-tile when even a thin (<=8 row) slab of full rows would blow the
    # per-tile budget (long-sequence / small-batch genomics shapes).
    if min(B, 8) * bytes_per_row > target_bytes and Lk >= 256:
        tb = B if B < 8 else 8
        tc_budget = max(target_bytes // (2 * tb * itemsize), 128)
        row_steps = pl.cdiv(B, tb)
        want_col_steps = max(pl.cdiv(min_steps, row_steps), 1)
        tc = min(tc_budget, pl.cdiv(Lk, want_col_steps), Lk)
        tc = max(128, (tc // 128) * 128)
        return tb, tc

    # Row-only tiling: largest multiple-of-8 row tile that fits the byte budget
    # while still leaving >= min_steps grid steps when B allows it.
    if B <= 8:
        return B, None
    tb = min(max(target_bytes // max(bytes_per_row, 1), 1),
             max(pl.cdiv(B, min_steps), 1))
    tb = max(8, (tb // 8) * 8)
    if tb >= B:
        tb = B
    return tb, None


def kmer2seq(indexed_kmer_seq: jax.Array, *, k: int, seq_len: int, num_tokens: int,
             block_rows: int | None = None, block_cols: int | None = None,
             force_pallas: bool = False) -> jax.Array:
    if k == 1:
        return indexed_kmer_seq           # module returns the input unchanged

    B, Lk = indexed_kmer_seq.shape
    if Lk != seq_len - k + 1:
        raise ValueError("kmer_seq_len must equal seq_len - k + 1")
    if num_tokens ** k - 1 > np.iinfo(indexed_kmer_seq.dtype).max:
        raise ValueError("num_tokens**k overflows the input integer dtype")

    itemsize = np.dtype(indexed_kmer_seq.dtype).itemsize
    total_bytes = B * (Lk + seq_len) * itemsize

    # Tiny problems: kernel launch + DMA setup dominate; let XLA fuse the shifts.
    if not force_pallas and total_bytes < _JAX_FALLBACK_BYTES:
        return _kmer2seq_jax(indexed_kmer_seq, k=k, num_tokens=num_tokens)

    tb, tc = _choose_tiles(B, Lk, seq_len, itemsize)
    if block_rows is not None:
        tb = B if block_rows >= B else max(8, (min(block_rows, B) // 8) * 8)
    if block_cols is not None:
        tc = max(128, (block_cols // 128) * 128)
    if tc is not None and tc >= Lk:
        tc = None                          # no real column tiling -> simpler path

    cost = pl.CostEstimate(flops=B * seq_len, transcendentals=0,
                           bytes_accessed=total_bytes)
    cparams = pltpu.CompilerParams(
        dimension_semantics=("parallel",) if tc is None else ("parallel", "parallel"),
        vmem_limit_bytes=_vmem_limit_bytes(),
    )
    out_shape = jax.ShapeDtypeStruct((B, seq_len), indexed_kmer_seq.dtype)

    if tc is None:
        kernel = functools.partial(_kmer2seq_kernel_full, k=k,
                                   num_tokens=num_tokens, kmer_seq_len=Lk)
        return pl.pallas_call(
            kernel,
            out_shape=out_shape,
            grid=(pl.cdiv(B, tb),),
            in_specs=[pl.BlockSpec((tb, Lk), lambda i: (i, 0))],
            out_specs=pl.BlockSpec((tb, seq_len), lambda i: (i, 0)),
            compiler_params=cparams,
            cost_estimate=cost,
        )(indexed_kmer_seq)

    nci = pl.cdiv(Lk, tc)                  # input column tiles
    nco = pl.cdiv(seq_len, tc)             # output column tiles (nci or nci+1)
    kernel = functools.partial(_kmer2seq_kernel_tiled, k=k, num_tokens=num_tokens,
                               kmer_seq_len=Lk, col_tile=tc, num_in_col_tiles=nci)
    return pl.pallas_call(
        kernel,
        out_shape=out_shape,
        grid=(pl.cdiv(B, tb), nco),
        # Output tiles past the last input tile re-read input tile nci-1 (it
        # holds the last k-mer needed for the tail digits).
        in_specs=[pl.BlockSpec((tb, tc), lambda i, j: (i, jnp.minimum(j, nci - 1)))],
        out_specs=pl.BlockSpec((tb, tc), lambda i, j: (i, j)),
        compiler_params=cparams,
        cost_estimate=cost,
    )(indexed_kmer_seq)


# --------------------------------------------------------------------------- #
# Reference (transliteration of the PyTorch forward) for verification
# --------------------------------------------------------------------------- #
def kmer2seq_ref(x: jax.Array, *, k: int, seq_len: int, num_tokens: int) -> jax.Array:
    if k == 1:
        return x
    B, Lk = x.shape
    out = jnp.zeros((B, seq_len), dtype=x.dtype)
    xk = x
    for kk in range(k):
        f = num_tokens ** (k - kk - 1)
        if kk == 0:
            out = out.at[:, 0:Lk].add(xk // f)
        else:
            out = out.at[:, Lk + kk - 1].set(xk[:, -1] // f)
        xk = xk % f
    return out


if __name__ == "__main__":
    key = jax.random.PRNGKey(0)

    # 1) tiny DNA-like (power-of-two vocab), single block, full-column kernel.
    k1, seq_len1, n1, b1 = 3, 8, 4, 2
    lk1 = seq_len1 - k1 + 1
    key, sub = jax.random.split(key)
    x1 = jax.random.randint(sub, (b1, lk1), 0, n1 ** k1, dtype=jnp.int32)
    out1 = jax.block_until_ready(
        kmer2seq(x1, k=k1, seq_len=seq_len1, num_tokens=n1, force_pallas=True))
    assert out1.shape == (b1, seq_len1) and out1.dtype == x1.dtype
    assert jnp.array_equal(out1, kmer2seq_ref(x1, k=k1, seq_len=seq_len1, num_tokens=n1))

    # 2) non-power-of-two vocab, ragged batch tiling (B=21, tb=8), full-column kernel.
    k2, seq_len2, n2, b2 = 4, 67, 5, 21
    lk2 = seq_len2 - k2 + 1
    key, sub = jax.random.split(key)
    x2 = jax.random.randint(sub, (b2, lk2), 0, n2 ** k2, dtype=jnp.int32)
    out2 = jax.block_until_ready(
        kmer2seq(x2, k=k2, seq_len=seq_len2, num_tokens=n2,
                 block_rows=8, force_pallas=True))
    assert jnp.array_equal(out2, kmer2seq_ref(x2, k=k2, seq_len=seq_len2, num_tokens=n2))

    # 3) column-tiled kernel (pow2 vocab): Lk is a multiple of the column tile,
    #    so the tail digits land in an extra output-only column tile.
    k3, n3, b3 = 4, 4, 21
    lk3 = 256
    seq_len3 = lk3 + k3 - 1                                    # 259 -> 3 out / 2 in col tiles
    key, sub = jax.random.split(key)
    x3 = jax.random.randint(sub, (b3, lk3), 0, n3 ** k3, dtype=jnp.int32)
    out3 = jax.block_until_ready(
        kmer2seq(x3, k=k3, seq_len=seq_len3, num_tokens=n3,
                 block_rows=8, block_cols=128, force_pallas=True))
    assert jnp.array_equal(out3, kmer2seq_ref(x3, k=k3, seq_len=seq_len3, num_tokens=n3))

    # 4) column-tiled kernel (non-pow2 vocab): ragged column + batch tiles,
    #    tail digits contained in the last regular column tile.
    k4, n4, b4 = 3, 5, 10
    lk4 = 300
    seq_len4 = lk4 + k4 - 1                                    # 302 -> 3 col tiles both
    key, sub = jax.random.split(key)
    x4 = jax.random.randint(sub, (b4, lk4), 0, n4 ** k4, dtype=jnp.int32)
    out4 = jax.block_until_ready(
        kmer2seq(x4, k=k4, seq_len=seq_len4, num_tokens=n4,
                 block_rows=8, block_cols=128, force_pallas=True))
    assert jnp.array_equal(out4, kmer2seq_ref(x4, k=k4, seq_len=seq_len4, num_tokens=n4))

    # 5) k == 1 identity and the tiny-problem pure-JAX fallback path.
    assert jnp.array_equal(kmer2seq(x1, k=1, seq_len=lk1, num_tokens=n1), x1)
    out5 = kmer2seq(x2, k=k2, seq_len=seq_len2, num_tokens=n2)  # below fallback threshold
    assert jnp.array_equal(out5, kmer2seq_ref(x2, k=k2, seq_len=seq_len2, num_tokens=n2))

    print("KERNEL_OK")
</pallas_src>

<mosaic_0001>
module attributes {stable_mosaic.version = 11 : i64} {
  func.func @_kmer2seq_kernel_full(%arg0: i32, %arg1: memref<2x6xi32, #tpu.memory_space<vmem>>, %arg2: memref<2x8xi32, #tpu.memory_space<vmem>>) attributes {dimension_semantics = [#tpu.dimension_semantics<parallel>], iteration_bounds = array<i64: 1>, scalar_prefetch = 0 : i64, scratch_operands = 0 : i64, tpu.core_type = #tpu.core_type<tc>, window_params = [{transform_indices = @transform_0, window_bounds = array<i64: 2, 6>}, {transform_indices = @transform_1, window_bounds = array<i64: 2, 8>}]} {
    %c0 = arith.constant 0 : index
    %c0_0 = arith.constant 0 : index
    %0 = vector.load %arg1[%c0, %c0_0] : memref<2x6xi32, #tpu.memory_space<vmem>>, vector<2x6xi32>
    %c4_i32 = arith.constant 4 : i32
    %1 = vector.broadcast %c4_i32 : i32 to vector<2x6xi32>
    %2 = arith.shrsi %0, %1 : vector<2x6xi32>
    %c0_1 = arith.constant 0 : index
    %c0_2 = arith.constant 0 : index
    %3 = vector.load %arg2[%c0_1, %c0_2] : memref<2x8xi32, #tpu.memory_space<vmem>>, vector<2x6xi32>
    tpu.vector_store %arg2[%c0_1, %c0_2], %2 {strides = array<i32>} : memref<2x8xi32, #tpu.memory_space<vmem>>, vector<2x6xi32>,
    %4 = vector.extract_strided_slice %0 {offsets = [0, 5], sizes = [2, 1], strides = [1, 1]} : vector<2x6xi32> to vector<2x1xi32>
    %5 = tpu.iota {dimensions = array<i32: 1>} : vector<2x2xi32>
    %c1_i32 = arith.constant 1 : i32
    %6 = vector.broadcast %c1_i32 : i32 to vector<2x2xi32>
    %7 = arith.subi %6, %5 : vector<2x2xi32>
    %c0_i32 = arith.constant 0 : i32
    %c1_i32_3 = arith.constant 1 : i32
    %8 = vector.broadcast %c0_i32 : i32 to vector<2x2xi32>
    %9 = arith.maxsi %8, %7 : vector<2x2xi32>
    %10 = vector.broadcast %c1_i32_3 : i32 to vector<2x2xi32>
    %11 = arith.minsi %10, %9 : vector<2x2xi32>
    %c2_i32 = arith.constant 2 : i32
    %12 = vector.broadcast %c2_i32 : i32 to vector<2x2xi32>
    %13 = arith.muli %11, %12 : vector<2x2xi32>
    %14 = vector.broadcast %4 : vector<2x1xi32> to vector<2x2xi32>
    %15 = arith.shrsi %14, %13 : vector<2x2xi32>
    %c3_i32 = arith.constant 3 : i32
    %16 = vector.broadcast %c3_i32 : i32 to vector<2x2xi32>
    %17 = arith.andi %15, %16 : vector<2x2xi32>
    %c0_4 = arith.constant 0 : index
    %c6 = arith.constant 6 : index
    %18 = vector.load %arg2[%c0_4, %c6] : memref<2x8xi32, #tpu.memory_space<vmem>>, vector<2x2xi32>
    tpu.vector_store %arg2[%c0_4, %c6], %17 {strides = array<i32>} : memref<2x8xi32, #tpu.memory_space<vmem>>, vector<2x2xi32>,
    return
  }
  func.func @transform_0(%arg0: i32) -> (i32, i32) {
    %c0_i32 = arith.constant 0 : i32
    %c0_i32_0 = arith.constant 0 : i32
    return %arg0, %c0_i32 : i32, i32
  }
  func.func @transform_1(%arg0: i32) -> (i32, i32) {
    %c0_i32 = arith.constant 0 : i32
    %c0_i32_0 = arith.constant 0 : i32
    return %arg0, %c0_i32 : i32, i32
  }
}

</mosaic_0001>

<llo_original>
// kernel: tpu_custom_call.1
$region0: #{tpu_custom_call.1}
  #allocation0 [shape = 'u32[]', space=smem, size = 0x4, offset = 0x4, fixed_abs, tag = 'smem constant byte address 0x4 - core index']
  #allocation1 [shape = 'u32[72,128]{1,0:T(1,128)}', space=vmem, size = 0x9000, scoped, tag = 'internal scratch']
  %s0 = inlined_call_operand.hbm [shape: s32[2,6], index: 0, kind: input, shape index: {}]
  %s1 = inlined_call_operand.hbm [shape: s32[2,8], index: 1, kind: output, shape index: {}]
  %s2 = sld [smem:[#allocation0]]
  $region18: #{tpu_custom_call.1} parent=0
    _
  %s4 = ssub.s32 1, %s2
  %s5 = scalar_select 0, %s4, %s2
  $region1: #{tpu_custom_call.1} parent=0
    #allocation2 [shape = 'u8[1024]{0}', space=vmem, size = 0x400, scoped, tag = 'input window, operand 0, single buffered']
    #allocation3 [shape = 's32[1]{0}', space=sflag, size = 0x4, scoped, tag = 'scoped memory for tpu_custom_call.1']
    #allocation4 [shape = 's32[1]{0}', space=sflag, size = 0x4, scoped, tag = 'scoped memory for tpu_custom_call.1']
    #allocation5 [shape = 'u8[1024]{0}', space=vmem, size = 0x400, scoped, tag = 'output window, operand 0, single buffered']
    %6 = vsyncpa [#allocation3], 0
    %7 = vsyncpa [#allocation4], 0
    // Predicated region
    $region2: #{tpu_custom_call.1} parent=1 // pred_check
      _
    $region3: #{tpu_custom_call.1} parent=1 // pred_check_branch
      %9 = sbr.rel (0) target = $region5
    $region4: #{tpu_custom_call.1} parent=1 // pred_region
      %11 = vsyncadd [#allocation3], 0
      %s13 = sshll.u32 %s0, 4
      %s14 = int_to_ptr.hbm [resolvable:$true] %s13
      %s15 = sshll.u32 [#allocation2], 4
      %s16 = int_to_ptr.vmem [resolvable:$true] %s15
      %18 = dma.hbm_to_vmem [thread:$0]  %s14, 32, %s16, [#allocation3]
    $region5: #{tpu_custom_call.1} parent=1 // pred_fallthru
      _
    // Predicated region
    $region6: #{tpu_custom_call.1} parent=1 // pred_check
      _
    $region7: #{tpu_custom_call.1} parent=1 // pred_check_branch
      %20 = sbr.rel (0) target = $region9
    $region8: #{tpu_custom_call.1} parent=1 // pred_region
      %22 = dma.done [#allocation3], 32
    $region9: #{tpu_custom_call.1} parent=1 // pred_fallthru
      _
    %v23 = vld [vmem:[#allocation2] sm:$0x3]
    %v24 = vshra.s32 %v23, 4
    %vm25 = vcmask 41984
    %26 = vst.msk [vmem:[#allocation5] sm:$0x3] %vm25, %v24
    %v27 = vlaneseq
    %v28 = vand.u32 %v27, 127
    %v29 = vsub.s32 1, %v28
    %vm30 = vcmp.gt.s32.totalorder %v29, 0
    %v31 = vsel %vm30, %v29, 0
    %vm32 = vcmp.lt.s32.totalorder %v31, 1
    %v33 = vsel %vm32, %v31, 1
    %v34 = vmul.u32 %v33, 2
    %35 = vset.pattern.permute.xlu0 5
    %36 = vperm.xlu0 %35, %v23
    %v37 = vpop.permute.xlu0 %36
    %v38 = vshra.s32 %v37, %v34
    %v39 = vand.u32 %v38, 3
    %40 = vrot.lane.b32.xlu0 %v39, 6
    %v41 = vpop.permute.xlu0 %40
    %vm42 = vcmask 58416
    %43 = vst.msk [vmem:[#allocation5] sm:$0x3] %vm42, %v41
    // Predicated region
    $region10: #{tpu_custom_call.1} parent=1 // pred_check
      _
    $region11: #{tpu_custom_call.1} parent=1 // pred_check_branch
      %45 = sbr.rel (0) target = $region13
    $region12: #{tpu_custom_call.1} parent=1 // pred_region
      %47 = vsyncadd [#allocation4], 0
      %s49 = sshll.u32 [#allocation5], 4
      %s50 = int_to_ptr.vmem [resolvable:$true] %s49
      %s51 = sshll.u32 %s1, 4
      %s52 = int_to_ptr.hbm [resolvable:$true] %s51
      %54 = dma.vmem_to_hbm [thread:$0]  %s50, 32, %s52, [#allocation4]
    $region13: #{tpu_custom_call.1} parent=1 // pred_fallthru
      _
    // Predicated region
    $region14: #{tpu_custom_call.1} parent=1 // pred_check
      _
    $region15: #{tpu_custom_call.1} parent=1 // pred_check_branch
      %56 = sbr.rel (0) target = $region17
    $region16: #{tpu_custom_call.1} parent=1 // pred_region
      %58 = dma.done [#allocation4], 32
    $region17: #{tpu_custom_call.1} parent=1 // pred_fallthru
      _
    %59 = vsyncpa [#allocation3], 1
    %60 = vsyncpa [#allocation4], 1

</llo_original>
